<compile_context>
chip_gen: v7x
topology: tpu7x:2x2x1
jax: 0.10.0
libtpu: 0.0.40
codegen_flags: <defaults>
</compile_context>

<pallas_src>
import math

import jax
import jax.numpy as jnp
import numpy as np
from jax import lax
from jax.experimental import pallas as pl
from jax.experimental.pallas import tpu as pltpu

LN_EPS = 1e-5  # torch.nn.LayerNorm default


def _round_up(x, m):
    return ((x + m - 1) // m) * m


# ----------------------------------------------------------------------------
# Pallas kernel: per row-tile of node tokens
#   emb_ref : (TM, D)   pre-summed categorical embeddings (bf16 in HBM)
#   feat_ref: (TM, 3)   packed [mass, vdw_radius, partial_charge]
#   coef_ref: (4, 3K)   rows 0..2 = selection*scale matrix (mul_f/std on the
#                        block diagonal), row 3 = (bias_f - mean_k)/std
#   w_ref   : (3K, D)   stacked gaussian->embed weights, inv_norm folded in
#   aff_ref : (3, D)    rows = [summed linear bias, ln_gamma, ln_beta]
# ----------------------------------------------------------------------------
def atom_embedding_kernel(emb_ref, feat_ref, coef_ref, w_ref, aff_ref, out_ref):
    feat = feat_ref[...]                                     # (TM, 3) f32
    sel = coef_ref[0:3, :]                                   # (3, 3K)
    b3 = coef_ref[3:4, :]                                    # (1, 3K)

    # z[t, f*K+k] = (mul_f * x_f[t] + bias_f - mean_k) / std
    z = jnp.dot(feat, sel, preferred_element_type=jnp.float32) + b3   # (TM, 3K)
    g = jnp.exp(-0.5 * z * z)                                # single EUP pass

    acc = emb_ref[...].astype(jnp.float32)                   # (TM, D)
    acc = acc + jnp.dot(g, w_ref[...], preferred_element_type=jnp.float32)
    acc = acc + aff_ref[0:1, :]                              # summed biases

    # final LayerNorm over embed dim
    mu = jnp.mean(acc, axis=-1, keepdims=True)
    var = jnp.mean((acc - mu) ** 2, axis=-1, keepdims=True)
    normed = (acc - mu) * lax.rsqrt(var + LN_EPS)
    out_ref[...] = normed * aff_ref[1:2, :] + aff_ref[2:3, :]
    # TODO(synk): if production embed_dim stays < 128, a lane-dense output
    # packing (4 tokens per 128-lane row + segmented LN) would avoid masked
    # stores; skipped here since typical embed_dim >= 128.


# ----------------------------------------------------------------------------
# Wrapper
# ----------------------------------------------------------------------------
def atom_embedding_forward(params, node_features, atom_names, *,
                           tm=512, emb_dtype=jnp.bfloat16):
    embed_tables = params["embed_tables"]
    D = embed_tables[0].shape[1]
    K = params["mean"].shape[0]

    B, N = node_features[atom_names[0]].shape
    T = B * N
    # Row tile: biggest requested tile that is a multiple of 8 and not
    # (much) larger than the token count.  At production sizes keep >=2 grid
    # steps so v7x's two TensorCores both get work; per-step VMEM use
    # (2x(emb+out) blocks + weights) stays far under the scoped default on
    # v5e (16 MiB) / v6e / v7x (32 MiB) for tm<=2048 at D<=1024.
    tm = max(8, min(tm, _round_up(T, 8)))
    tm = _round_up(tm, 8)
    T_pad = _round_up(T, tm)
    pad = T_pad - T

    # --- plain-JAX glue: integer-index gathers, pre-summed (no Pallas gather)
    emb_sum = embed_tables[0][node_features[atom_names[0]]].reshape(T, D)
    for i, name in enumerate(atom_names[1:], start=1):
        emb_sum = emb_sum + embed_tables[i][node_features[name]].reshape(T, D)
    emb_sum = jnp.pad(emb_sum, ((0, pad), (0, 0))).astype(emb_dtype)   # (T_pad, D)

    # scalar features packed into a single (T_pad, 3) stream
    feat3 = jnp.stack(
        [node_features["mass"].reshape(T),
         node_features["van_der_waals_radius"].reshape(T),
         node_features["partial_charge"].reshape(T)], axis=-1).astype(jnp.float32)
    feat3 = jnp.pad(feat3, ((0, pad), (0, 0)))                          # (T_pad, 3)

    mean = params["mean"].astype(jnp.float32)                           # (K,)
    std = params["std"].astype(jnp.float32)
    inv_norm = 1.0 / (jnp.sqrt(2.0 * jnp.pi) * std)

    muls = jnp.stack([params["mul_mass"], params["mul_vdw"],
                      params["mul_chg"]]).astype(jnp.float32)           # (3,)
    biases = jnp.stack([params["bias_mass"], params["bias_vdw"],
                        params["bias_chg"]]).astype(jnp.float32)        # (3,)

    # sel[f, f*K+k] = mul_f / std  (block-diagonal selection * scale)
    sel = jnp.repeat(jnp.diag(muls / std), K, axis=1)                   # (3, 3K)
    # b3[f*K+k] = (bias_f - mean_k) / std
    b3 = ((biases[:, None] - mean[None, :]) / std).reshape(1, 3 * K)    # (1, 3K)
    coef = jnp.concatenate([sel, b3], axis=0)                           # (4, 3K)

    # stacked gaussian->embed weights with the 1/(sqrt(2pi)*std) factor folded in
    w3 = jnp.concatenate([params["w_mass"], params["w_vdw"],
                          params["w_chg"]], axis=0) * inv_norm          # (3K, D)
    bsum = (params["b_mass"] + params["b_vdw"] + params["b_chg"]).reshape(1, D)
    gamma = params["ln_gamma"].reshape(1, D)
    beta = params["ln_beta"].reshape(1, D)
    aff = jnp.concatenate([bsum, gamma, beta], axis=0)                  # (3, D)

    grid = (T_pad // tm,)
    nodes = pl.pallas_call(
        atom_embedding_kernel,
        out_shape=jax.ShapeDtypeStruct((T_pad, D), jnp.float32),
        grid=grid,
        in_specs=[
            pl.BlockSpec((tm, D), lambda i: (i, 0)),        # pre-summed embeddings
            pl.BlockSpec((tm, 3), lambda i: (i, 0)),        # packed scalar features
            pl.BlockSpec((4, 3 * K), lambda i: (0, 0)),     # sel + b3
            pl.BlockSpec((3 * K, D), lambda i: (0, 0)),     # stacked gaussian weights
            pl.BlockSpec((3, D), lambda i: (0, 0)),         # [bias_sum, gamma, beta]
        ],
        out_specs=pl.BlockSpec((tm, D), lambda i: (i, 0)),
        compiler_params=pltpu.CompilerParams(
            dimension_semantics=("parallel",)),
    )(emb_sum, feat3, coef, w3, aff)

    nodes = nodes[:T].reshape(B, N, D)

    # graph token (single row, identical across batch): LayerNorm in glue
    gw = params["graph_w"].astype(jnp.float32)                          # (1, D)
    mu = gw.mean(-1, keepdims=True)
    var = ((gw - mu) ** 2).mean(-1, keepdims=True)
    g_tok = (gw - mu) / jnp.sqrt(var + LN_EPS) * gamma + beta           # (1, D)
    graph_token = jnp.broadcast_to(g_tok[None], (B, 1, D))

    return jnp.concatenate([graph_token, nodes], axis=1)                # (B, N+1, D)


# ----------------------------------------------------------------------------
# Pure-JAX reference (mirrors the PyTorch forward) for correctness check
# ----------------------------------------------------------------------------
def atom_embedding_reference(params, node_features, atom_names):
    D = params["embed_tables"][0].shape[1]
    mean = params["mean"]
    std = params["std"]

    out = 0.0
    for i, name in enumerate(atom_names):
        out = out + params["embed_tables"][i][node_features[name]]

    def gk_linear(x, mul, bias, w, b):
        y = mul * x[..., None] + bias
        z = (y - mean) / std
        g = jnp.exp(-0.5 * z * z) / (jnp.sqrt(2.0 * jnp.pi) * std)
        return g @ w + b

    out = out + gk_linear(node_features["mass"], params["mul_mass"],
                          params["bias_mass"], params["w_mass"], params["b_mass"])
    out = out + gk_linear(node_features["van_der_waals_radius"], params["mul_vdw"],
                          params["bias_vdw"], params["w_vdw"], params["b_vdw"])
    out = out + gk_linear(node_features["partial_charge"], params["mul_chg"],
                          params["bias_chg"], params["w_chg"], params["b_chg"])

    B = out.shape[0]
    graph_token = jnp.broadcast_to(params["graph_w"][None], (B, 1, D))
    out = jnp.concatenate([graph_token, out], axis=1)

    mu = out.mean(-1, keepdims=True)
    var = ((out - mu) ** 2).mean(-1, keepdims=True)
    return (out - mu) / jnp.sqrt(var + LN_EPS) * params["ln_gamma"] + params["ln_beta"]


# ----------------------------------------------------------------------------
# Deterministic parameter / input construction
# ----------------------------------------------------------------------------
def build_params(key, atom_names, vocab_sizes, embed_dim, num_kernel):
    keys = jax.random.split(key, 16)
    embed_tables = []
    for i, name in enumerate(atom_names):
        V = vocab_sizes[name] + 5   # CompoundKit.get_atom_feature_size(name) + 5 (synthetic)
        tbl = 0.02 * jax.random.normal(keys[i], (V, embed_dim), jnp.float32)
        tbl = tbl.at[0].set(0.0)    # padding_idx=0
        embed_tables.append(tbl)

    mean = jnp.linspace(0.0, 9.0, num_kernel).astype(jnp.float32)
    std = jnp.float32(1.0 * (mean[1] - mean[0]))

    def lin(kw, kb):
        w = jax.random.normal(kw, (num_kernel, embed_dim), jnp.float32) / math.sqrt(num_kernel)
        b = 0.01 * jax.random.normal(kb, (embed_dim,), jnp.float32)
        return w, b

    w_mass, b_mass = lin(keys[4], keys[5])
    w_vdw, b_vdw = lin(keys[6], keys[7])
    w_chg, b_chg = lin(keys[8], keys[9])

    # TODO(synk): graph_finger_print (Linear/LayerNorm/SiLU/Linear on a 2048-d
    # fingerprint) is defined in __init__ but never used in forward(); omitted.
    return dict(
        embed_tables=embed_tables,
        graph_w=0.02 * jax.random.normal(keys[10], (1, embed_dim), jnp.float32),
        mean=mean, std=std,
        mul_mass=jnp.float32(1.0), bias_mass=jnp.float32(0.0),  # Embedding(1,1) inits
        mul_vdw=jnp.float32(1.0), bias_vdw=jnp.float32(0.0),
        mul_chg=jnp.float32(1.0), bias_chg=jnp.float32(0.0),
        w_mass=w_mass, b_mass=b_mass,
        w_vdw=w_vdw, b_vdw=b_vdw,
        w_chg=w_chg, b_chg=b_chg,
        ln_gamma=jnp.ones((embed_dim,), jnp.float32),
        ln_beta=jnp.zeros((embed_dim,), jnp.float32),
    )


if __name__ == "__main__":
    atom_names = ["atomic_num", "degree", "chiral_tag"]
    # synthetic feature vocab sizes (CompoundKit is not available in-script)
    vocab_sizes = {"atomic_num": 20, "degree": 12, "chiral_tag": 8}
    embed_dim, num_kernel = 32, 16
    B, N = 2, 7

    key = jax.random.PRNGKey(0)
    pkey, ikey = jax.random.split(key)
    params = build_params(pkey, atom_names, vocab_sizes, embed_dim, num_kernel)

    ikeys = jax.random.split(ikey, 6)
    node_features = {
        "atomic_num": jax.random.randint(ikeys[0], (B, N), 0, vocab_sizes["atomic_num"] + 5),
        "degree": jax.random.randint(ikeys[1], (B, N), 0, vocab_sizes["degree"] + 5),
        "chiral_tag": jax.random.randint(ikeys[2], (B, N), 0, vocab_sizes["chiral_tag"] + 5),
        "mass": jax.random.uniform(ikeys[3], (B, N), jnp.float32, 0.0, 9.0),
        "van_der_waals_radius": jax.random.uniform(ikeys[4], (B, N), jnp.float32, 0.5, 3.0),
        "partial_charge": jax.random.uniform(ikeys[5], (B, N), jnp.float32, -1.0, 1.0),
    }

    out = atom_embedding_forward(params, node_features, atom_names)
    out = jax.block_until_ready(out)
    assert out.shape == (B, N + 1, embed_dim), out.shape

    ref = jax.block_until_ready(atom_embedding_reference(params, node_features, atom_names))
    np.testing.assert_allclose(np.asarray(out), np.asarray(ref), rtol=2e-2, atol=2e-2)

    print("KERNEL_OK")
</pallas_src>

<mosaic_0001>
module attributes {stable_mosaic.version = 11 : i64} {
  func.func @atom_embedding_kernel(%arg0: i32, %arg1: memref<16x32xbf16, #tpu.memory_space<vmem>>, %arg2: memref<16x3xf32, #tpu.memory_space<vmem>>, %arg3: memref<4x48xf32, #tpu.memory_space<vmem>>, %arg4: memref<48x32xf32, #tpu.memory_space<vmem>>, %arg5: memref<3x32xf32, #tpu.memory_space<vmem>>, %arg6: memref<16x32xf32, #tpu.memory_space<vmem>>) attributes {dimension_semantics = [#tpu.dimension_semantics<parallel>], iteration_bounds = array<i64: 1>, scalar_prefetch = 0 : i64, scratch_operands = 0 : i64, tpu.core_type = #tpu.core_type<tc>, window_params = [{transform_indices = @transform_0, window_bounds = array<i64: 16, 32>}, {transform_indices = @transform_1, window_bounds = array<i64: 16, 3>}, {pipeline_mode = #tpu.pipeline_mode<synchronous>, transform_indices = @transform_2, window_bounds = array<i64: 4, 48>}, {pipeline_mode = #tpu.pipeline_mode<synchronous>, transform_indices = @transform_3, window_bounds = array<i64: 48, 32>}, {pipeline_mode = #tpu.pipeline_mode<synchronous>, transform_indices = @transform_4, window_bounds = array<i64: 3, 32>}, {transform_indices = @transform_5, window_bounds = array<i64: 16, 32>}]} {
    %c0 = arith.constant 0 : index
    %c0_0 = arith.constant 0 : index
    %0 = vector.load %arg2[%c0, %c0_0] : memref<16x3xf32, #tpu.memory_space<vmem>>, vector<16x3xf32>
    %c0_1 = arith.constant 0 : index
    %c0_2 = arith.constant 0 : index
    %1 = vector.load %arg3[%c0_1, %c0_2] : memref<4x48xf32, #tpu.memory_space<vmem>>, vector<3x48xf32>
    %c3 = arith.constant 3 : index
    %c0_3 = arith.constant 0 : index
    %2 = vector.load %arg3[%c3, %c0_3] : memref<4x48xf32, #tpu.memory_space<vmem>>, vector<1x48xf32>
    %cst = arith.constant dense<0.000000e+00> : vector<16x48xf32>
    %3 = tpu.matmul %0, %1, %cst {dimension_numbers = #tpu.dot_dimension_numbers<[1], [0], [0], [1], [0, 0, 1, 1], [], []>} : vector<16x3xf32>, vector<3x48xf32>, vector<16x48xf32> -> vector<16x48xf32>
    %4 = vector.broadcast %2 : vector<1x48xf32> to vector<16x48xf32>
    %5 = arith.addf %3, %4 : vector<16x48xf32>
    %cst_4 = arith.constant -5.000000e-01 : f32
    %6 = vector.broadcast %cst_4 : f32 to vector<16x48xf32>
    %7 = arith.mulf %6, %5 : vector<16x48xf32>
    %8 = arith.mulf %7, %5 : vector<16x48xf32>
    %9 = math.exp %8 : vector<16x48xf32>
    %c0_5 = arith.constant 0 : index
    %c0_6 = arith.constant 0 : index
    %10 = vector.load %arg1[%c0_5, %c0_6] : memref<16x32xbf16, #tpu.memory_space<vmem>>, vector<16x32xbf16>
    %11 = arith.extf %10 : vector<16x32xbf16> to vector<16x32xf32>
    %c0_7 = arith.constant 0 : index
    %c0_8 = arith.constant 0 : index
    %12 = vector.load %arg4[%c0_7, %c0_8] : memref<48x32xf32, #tpu.memory_space<vmem>>, vector<48x32xf32>
    %cst_9 = arith.constant dense<0.000000e+00> : vector<16x32xf32>
    %13 = tpu.matmul %9, %12, %cst_9 {dimension_numbers = #tpu.dot_dimension_numbers<[1], [0], [0], [1], [0, 0, 1, 1], [], []>} : vector<16x48xf32>, vector<48x32xf32>, vector<16x32xf32> -> vector<16x32xf32>
    %14 = arith.addf %11, %13 : vector<16x32xf32>
    %c0_10 = arith.constant 0 : index
    %c0_11 = arith.constant 0 : index
    %15 = vector.load %arg5[%c0_10, %c0_11] : memref<3x32xf32, #tpu.memory_space<vmem>>, vector<1x32xf32>
    %16 = vector.broadcast %15 : vector<1x32xf32> to vector<16x32xf32>
    %17 = arith.addf %14, %16 : vector<16x32xf32>
    %cst_12 = arith.constant dense<0.000000e+00> : vector<16xf32>
    %18 = vector.multi_reduction <add>, %17, %cst_12 [1] : vector<16x32xf32> to vector<16xf32>
    %19 = vector.shape_cast %18 : vector<16xf32> to vector<16x1xf32>
    %cst_13 = arith.constant 3.200000e+01 : f32
    %20 = vector.broadcast %cst_13 : f32 to vector<16x1xf32>
    %21 = arith.divf %19, %20 : vector<16x1xf32>
    %22 = vector.broadcast %21 : vector<16x1xf32> to vector<16x32xf32>
    %23 = arith.subf %17, %22 : vector<16x32xf32>
    %24 = arith.mulf %23, %23 : vector<16x32xf32>
    %cst_14 = arith.constant dense<0.000000e+00> : vector<16xf32>
    %25 = vector.multi_reduction <add>, %24, %cst_14 [1] : vector<16x32xf32> to vector<16xf32>
    %26 = vector.shape_cast %25 : vector<16xf32> to vector<16x1xf32>
    %cst_15 = arith.constant 3.200000e+01 : f32
    %27 = vector.broadcast %cst_15 : f32 to vector<16x1xf32>
    %28 = arith.divf %26, %27 : vector<16x1xf32>
    %29 = vector.broadcast %21 : vector<16x1xf32> to vector<16x32xf32>
    %30 = arith.subf %17, %29 : vector<16x32xf32>
    %cst_16 = arith.constant 9.99999974E-6 : f32
    %31 = vector.broadcast %cst_16 : f32 to vector<16x1xf32>
    %32 = arith.addf %28, %31 : vector<16x1xf32>
    %33 = math.rsqrt %32 : vector<16x1xf32>
    %34 = vector.broadcast %33 : vector<16x1xf32> to vector<16x32xf32>
    %35 = arith.mulf %30, %34 : vector<16x32xf32>
    %c1 = arith.constant 1 : index
    %c0_17 = arith.constant 0 : index
    %36 = vector.load %arg5[%c1, %c0_17] : memref<3x32xf32, #tpu.memory_space<vmem>>, vector<1x32xf32>
    %37 = vector.broadcast %36 : vector<1x32xf32> to vector<16x32xf32>
    %38 = arith.mulf %35, %37 : vector<16x32xf32>
    %c2 = arith.constant 2 : index
    %c0_18 = arith.constant 0 : index
    %39 = vector.load %arg5[%c2, %c0_18] : memref<3x32xf32, #tpu.memory_space<vmem>>, vector<1x32xf32>
    %40 = vector.broadcast %39 : vector<1x32xf32> to vector<16x32xf32>
    %41 = arith.addf %38, %40 : vector<16x32xf32>
    %c0_19 = arith.constant 0 : index
    %c0_20 = arith.constant 0 : index
    %42 = vector.load %arg6[%c0_19, %c0_20] : memref<16x32xf32, #tpu.memory_space<vmem>>, vector<16x32xf32>
    tpu.vector_store %arg6[%c0_19, %c0_20], %41 {strides = array<i32>} : memref<16x32xf32, #tpu.memory_space<vmem>>, vector<16x32xf32>,
    return
  }
  func.func @transform_0(%arg0: i32) -> (i32, i32) {
    %c0_i32 = arith.constant 0 : i32
    %c0_i32_0 = arith.constant 0 : i32
    return %arg0, %c0_i32 : i32, i32
  }
  func.func @transform_1(%arg0: i32) -> (i32, i32) {
    %c0_i32 = arith.constant 0 : i32
    %c0_i32_0 = arith.constant 0 : i32
    return %arg0, %c0_i32 : i32, i32
  }
  func.func @transform_2(%arg0: i32) -> (i32, i32) {
    %c0_i32 = arith.constant 0 : i32
    %c0_i32_0 = arith.constant 0 : i32
    %c0_i32_1 = arith.constant 0 : i32
    return %c0_i32, %c0_i32_0 : i32, i32
  }
  func.func @transform_3(%arg0: i32) -> (i32, i32) {
    %c0_i32 = arith.constant 0 : i32
    %c0_i32_0 = arith.constant 0 : i32
    %c0_i32_1 = arith.constant 0 : i32
    return %c0_i32, %c0_i32_0 : i32, i32
  }
  func.func @transform_4(%arg0: i32) -> (i32, i32) {
    %c0_i32 = arith.constant 0 : i32
    %c0_i32_0 = arith.constant 0 : i32
    %c0_i32_1 = arith.constant 0 : i32
    return %c0_i32, %c0_i32_0 : i32, i32
  }
  func.func @transform_5(%arg0: i32) -> (i32, i32) {
    %c0_i32 = arith.constant 0 : i32
    %c0_i32_0 = arith.constant 0 : i32
    return %arg0, %c0_i32 : i32, i32
  }
}

</mosaic_0001>

<llo_original>
// kernel: tpu_custom_call.1
$region0: #{tpu_custom_call.1}
  #allocation0 [shape = 'u32[]', space=smem, size = 0x4, offset = 0x4, fixed_abs, tag = 'smem constant byte address 0x4 - core index']
  #allocation1 [shape = 'u32[144,128]{1,0:T(1,128)}', space=vmem, size = 0x12000, scoped, tag = 'internal scratch']
  %s0 = inlined_call_operand.vmem [shape: bf16[16,32], index: 0, kind: input, shape index: {}]
  %s1 = inlined_call_operand.vmem [shape: f32[16,3], index: 1, kind: input, shape index: {}]
  %s2 = inlined_call_operand.vmem [shape: f32[4,48], index: 2, kind: input, shape index: {}]
  %s3 = inlined_call_operand.vmem [shape: f32[48,32], index: 3, kind: input, shape index: {}]
  %s4 = inlined_call_operand.vmem [shape: f32[3,32], index: 4, kind: input, shape index: {}]
  %s5 = inlined_call_operand.hbm [shape: f32[16,32], index: 5, kind: output, shape index: {}]
  %s6 = sld [smem:[#allocation0]]
  $region30: #{tpu_custom_call.1} parent=0
    _
  %s8 = ssub.s32 1, %s6
  %s9 = scalar_select 0, %s8, %s6
  $region1: #{tpu_custom_call.1} parent=0
    #allocation2 [shape = 'u8[8192]{0}', space=vmem, size = 0x2000, scoped, tag = 'output window, operand 0, single buffered']
    #allocation3 [shape = 's32[1]{0}', space=sflag, size = 0x4, scoped, tag = 'scoped memory for tpu_custom_call.1']
    %10 = vsyncpa [#allocation3], 0
    // Predicated region
    $region2: #{tpu_custom_call.1} parent=1 // pred_check
      _
    $region3: #{tpu_custom_call.1} parent=1 // pred_check_branch
      %12 = sbr.rel (0) target = $region5
    $region4: #{tpu_custom_call.1} parent=1 // pred_region
      _
    $region5: #{tpu_custom_call.1} parent=1 // pred_fallthru
      _
    // Predicated region
    $region6: #{tpu_custom_call.1} parent=1 // pred_check
      _
    $region7: #{tpu_custom_call.1} parent=1 // pred_check_branch
      %14 = sbr.rel (0) target = $region9
    $region8: #{tpu_custom_call.1} parent=1 // pred_region
      _
    $region9: #{tpu_custom_call.1} parent=1 // pred_fallthru
      _
    // Predicated region
    $region10: #{tpu_custom_call.1} parent=1 // pred_check
      _
    $region11: #{tpu_custom_call.1} parent=1 // pred_check_branch
      %16 = sbr.rel (0) target = $region13
    $region12: #{tpu_custom_call.1} parent=1 // pred_region
      _
    $region13: #{tpu_custom_call.1} parent=1 // pred_fallthru
      _
    // Predicated region
    $region14: #{tpu_custom_call.1} parent=1 // pred_check
      _
    $region15: #{tpu_custom_call.1} parent=1 // pred_check_branch
      %18 = sbr.rel (0) target = $region17
    $region16: #{tpu_custom_call.1} parent=1 // pred_region
      _
    $region17: #{tpu_custom_call.1} parent=1 // pred_fallthru
      _
    // Predicated region
    $region18: #{tpu_custom_call.1} parent=1 // pred_check
      _
    $region19: #{tpu_custom_call.1} parent=1 // pred_check_branch
      %20 = sbr.rel (0) target = $region21
    $region20: #{tpu_custom_call.1} parent=1 // pred_region
      _
    $region21: #{tpu_custom_call.1} parent=1 // pred_fallthru
      _
    %v21 = vld [vmem:[%s1] sm:$0xff]
    %v22 = vld [vmem:[%s1 + $0x8] sm:$0xff]
    %v23 = vld [vmem:[%s2] sm:$0x7]
    %v24 = vld [vmem:[%s2 + $0x3] sm:$0x1]
    %v25 = vlaneseq
    %v26 = vshrl.u32 %v25, 7
    %v27 = vsub.s32 0, %v26
    %v28 = vrot.slane %v24, %v27
    %vm29 = vcmask 23552
    %v31 = vsel %vm29, %v21, 0
    %v34 = vsel %vm29, %v22, 0
    %vm36 = vcmask 1042432
    %v38 = vsel %vm36, %v23, 0
    %40 = vmatprep.subr.mxu0 0.0
    %41 = vmatpush1.msra.mxu0 %v38
    %42 = vmatprep.subr.mxu0 0.0
    %43 = vmatpush1.msra.mxu0 0.0
    %44 = vmatprep.subr.mxu0 0.0
    %45 = vmatpush1.msra.mxu0 0.0
    %46 = vmatprep.subr.mxu0 0.0
    %47 = vmatpush1.msra.mxu0 0.0
    %48 = vmatprep.subr.mxu0 0.0
    %49 = vmatpush1.msra.mxu0 0.0
    %50 = vmatprep.subr.mxu0 0.0
    %51 = vmatpush1.msra.mxu0 0.0
    %52 = vmatprep.subr.mxu0 0.0
    %53 = vmatpush1.msra.mxu0 0.0
    %54 = vmatprep.subr.mxu0 0.0
    %55 = vmatpush1.msra.mxu0 0.0
    %56 = vmatprep.subr.mxu0 0.0
    %57 = vmatpush1.msra.mxu0 0.0
    %58 = vmatprep.subr.mxu0 0.0
    %59 = vmatpush1.msra.mxu0 0.0
    %60 = vmatprep.subr.mxu0 0.0
    %61 = vmatpush1.msra.mxu0 0.0
    %62 = vmatprep.subr.mxu0 0.0
    %63 = vmatpush1.msra.mxu0 0.0
    %64 = vmatprep.subr.mxu0 0.0
    %65 = vmatpush1.msra.mxu0 0.0
    %66 = vmatprep.subr.mxu0 0.0
    %67 = vmatpush1.msra.mxu0 0.0
    %68 = vmatprep.subr.mxu0 0.0
    %69 = vmatpush1.msra.mxu0 0.0
    %70 = vmatprep.subr.mxu0 0.0
    %71 = vmatpush1.msra.mxu0 0.0
    %72 = vmatprep.subr.mxu0 0.0
    %73 = vmatpush1.msra.mxu0 0.0
    %74 = vmatprep.subr.mxu0 0.0
    %75 = vmatpush1.msra.mxu0 0.0
    %76 = vmatprep.subr.mxu0 0.0
    %77 = vmatpush1.msra.mxu0 0.0
    %78 = vmatprep.subr.mxu0 0.0
    %79 = vmatpush1.msra.mxu0 0.0
    %80 = vmatprep.subr.mxu0 0.0
    %81 = vmatpush1.msra.mxu0 0.0
    %82 = vmatprep.subr.mxu0 0.0
    %83 = vmatpush1.msra.mxu0 0.0
    %84 = vmatprep.subr.mxu0 0.0
    %85 = vmatpush1.msra.mxu0 0.0
    %86 = vmatprep.subr.mxu0 0.0
    %87 = vmatpush1.msra.mxu0 0.0
    %88 = vmatprep.subr.mxu0 0.0
    %89 = vmatpush1.msra.mxu0 0.0
    %90 = vmatprep.subr.mxu0 0.0
    %91 = vmatpush1.msra.mxu0 0.0
    %92 = vmatprep.subr.mxu0 0.0
    %93 = vmatpush1.msra.mxu0 0.0
    %94 = vmatprep.subr.mxu0 0.0
    %95 = vmatpush1.msra.mxu0 0.0
    %96 = vmatprep.subr.mxu0 0.0
    %97 = vmatpush1.msra.mxu0 0.0
    %98 = vmatprep.subr.mxu0 0.0
    %99 = vmatpush1.msra.mxu0 0.0
    %100 = vmatprep.subr.mxu0 0.0
    %101 = vmatpush1.msra.mxu0 0.0
    %102 = vmatprep.subr.mxu0 0.0
    %103 = vmatpush1.msra.mxu0 0.0
    %104 = vmatprep.mubr.f32.mxu0 0.0
    %105 = vmatmul.mubr.f32.gmra.mrb[0].mxu0 %v31
    %v106 = vpop.f32.mrb[0].mxu0
    %v107 = vadd.f32 %v28, %v106
    %v108 = vpop.f32.mrb[0].mxu0
    %109 = vmatprep.mubr.f32.mxu0 0.0
    %110 = vmatmul.mubr.f32.gmra.mrb[0].mxu0 %v34
    %v111 = vpop.f32.mrb[0].mxu0
    %v112 = vadd.f32 %v28, %v111
    %v113 = vpop.f32.mrb[0].mxu0
    %114 = vdwg.mxu0
    %v115 = vmul.f32 %v107, -0.5
    %v116 = vmul.f32 %v112, -0.5
    %v117 = vmul.f32 %v115, %v107
    %v118 = vmul.f32 %v116, %v112
    %v119 = vmul.f32 %v117, 1.442695
    %v120 = vpow.pop %v119
    %v121 = vmul.f32 %v118, 1.442695
    %v122 = vpow.pop %v121
    %v123 = vld [vmem:[%s0] sm:$0xf]
    %v124 = vld [vmem:[%s0 + $0x4] sm:$0xf]
    %v125 = vunpack.c.l.bf16 %v123
    %v126 = vunpack.c.l.bf16 %v124
    %v127 = vld [vmem:[%s3] sm:$0xff]
    %v128 = vld [vmem:[%s3 + $0x8] sm:$0xff]
    %v129 = vld [vmem:[%s3 + $0x10] sm:$0xff]
    %v130 = vld [vmem:[%s3 + $0x18] sm:$0xff]
    %v131 = vld [vmem:[%s3 + $0x20] sm:$0xff]
    %v132 = vld [vmem:[%s3 + $0x28] sm:$0xff]
    %vm133 = vcmask 392192
    %v135 = vsel %vm133, %v120, 0
    %v138 = vsel %vm133, %v122, 0
    %140 = vmatprep.subr.mxu0 0.0
    %141 = vmatpush1.msra.mxu0 %v127
    %142 = vmatprep.subr.mxu0 0.0
    %143 = vmatpush1.msra.mxu0 %v128
    %144 = vmatprep.subr.mxu0 0.0
    %145 = vmatpush1.msra.mxu0 %v129
    %146 = vmatprep.subr.mxu0 0.0
    %147 = vmatpush1.msra.mxu0 %v130
    %148 = vmatprep.subr.mxu0 0.0
    %149 = vmatpush1.msra.mxu0 %v131
    %150 = vmatprep.subr.mxu0 0.0
    %151 = vmatpush1.msra.mxu0 %v132
    %152 = vmatprep.subr.mxu0 0.0
    %153 = vmatpush1.msra.mxu0 0.0
    %154 = vmatprep.subr.mxu0 0.0
    %155 = vmatpush1.msra.mxu0 0.0
    %156 = vmatprep.subr.mxu0 0.0
    %157 = vmatpush1.msra.mxu0 0.0
    %158 = vmatprep.subr.mxu0 0.0
    %159 = vmatpush1.msra.mxu0 0.0
    %160 = vmatprep.subr.mxu0 0.0
    %161 = vmatpush1.msra.mxu0 0.0
    %162 = vmatprep.subr.mxu0 0.0
    %163 = vmatpush1.msra.mxu0 0.0
    %164 = vmatprep.subr.mxu0 0.0
    %165 = vmatpush1.msra.mxu0 0.0
    %166 = vmatprep.subr.mxu0 0.0
    %167 = vmatpush1.msra.mxu0 0.0
    %168 = vmatprep.subr.mxu0 0.0
    %169 = vmatpush1.msra.mxu0 0.0
    %170 = vmatprep.subr.mxu0 0.0
    %171 = vmatpush1.msra.mxu0 0.0
    %172 = vmatprep.subr.mxu0 0.0
    %173 = vmatpush1.msra.mxu0 0.0
    %174 = vmatprep.subr.mxu0 0.0
    %175 = vmatpush1.msra.mxu0 0.0
    %176 = vmatprep.subr.mxu0 0.0
    %177 = vmatpush1.msra.mxu0 0.0
    %178 = vmatprep.subr.mxu0 0.0
    %179 = vmatpush1.msra.mxu0 0.0
    %180 = vmatprep.subr.mxu0 0.0
    %181 = vmatpush1.msra.mxu0 0.0
    %182 = vmatprep.subr.mxu0 0.0
    %183 = vmatpush1.msra.mxu0 0.0
    %184 = vmatprep.subr.mxu0 0.0
    %185 = vmatpush1.msra.mxu0 0.0
    %186 = vmatprep.subr.mxu0 0.0
    %187 = vmatpush1.msra.mxu0 0.0
    %188 = vmatprep.subr.mxu0 0.0
    %189 = vmatpush1.msra.mxu0 0.0
    %190 = vmatprep.subr.mxu0 0.0
    %191 = vmatpush1.msra.mxu0 0.0
    %192 = vmatprep.subr.mxu0 0.0
    %193 = vmatpush1.msra.mxu0 0.0
    %194 = vmatprep.subr.mxu0 0.0
    %195 = vmatpush1.msra.mxu0 0.0
    %196 = vmatprep.subr.mxu0 0.0
    %197 = vmatpush1.msra.mxu0 0.0
    %198 = vmatprep.subr.mxu0 0.0
    %199 = vmatpush1.msra.mxu0 0.0
    %200 = vmatprep.subr.mxu0 0.0
    %201 = vmatpush1.msra.mxu0 0.0
    %202 = vmatprep.subr.mxu0 0.0
    %203 = vmatpush1.msra.mxu0 0.0
    %204 = vmatprep.mubr.f32.mxu0 0.0
    %205 = vmatmul.mubr.f32.gmra.mrb[0].mxu0 %v135
    %v206 = vpop.f32.mrb[0].mxu0
    %v207 = vadd.f32 0.0, %v206
    %v208 = vpop.f32.mrb[0].mxu0
    %209 = vmatprep.mubr.f32.mxu0 0.0
    %210 = vmatmul.mubr.f32.gmra.mrb[0].mxu0 %v138
    %v211 = vpop.f32.mrb[0].mxu0
    %v212 = vadd.f32 0.0, %v211
    %v213 = vpop.f32.mrb[0].mxu0
    %214 = vdwg.mxu0
    %v215 = vadd.f32 %v125, %v207
    %v216 = vadd.f32 %v126, %v212
    %v217 = vld [vmem:[%s4] sm:$0x1]
    %v218 = vlaneseq
    %v219 = vshrl.u32 %v218, 7
    %v220 = vsub.s32 0, %v219
    %v221 = vrot.slane %v217, %v220
    %v222 = vadd.f32 %v215, %v221
    %v223 = vadd.f32 %v216, %v221
    %vm224 = vcmask 261120
    %v225 = vsel %vm224, %v222, 0.0
    %226 = vadd.xlane.f32.xlu0 %v225
    %v227 = vpop.xlane.xlu0 %226
    %v228 = vsel %vm224, %v223, 0.0
    %229 = vadd.xlane.f32.xlu0 %v228
    %v230 = vpop.xlane.xlu0 %229
    %v231 = vrcp.pop 32.0
    %v232 = vmul.f32 %v227, %v231
    %v233 = vmul.f32 %v230, %v231
    %v234 = vsub.f32 %v222, %v232
    %v235 = vsub.f32 %v223, %v233
    %v236 = vmul.f32 %v234, %v234
    %v237 = vmul.f32 %v235, %v235
    %v238 = vsel %vm224, %v236, 0.0
    %239 = vadd.xlane.f32.xlu0 %v238
    %v240 = vpop.xlane.xlu0 %239
    %v241 = vsel %vm224, %v237, 0.0
    %242 = vadd.xlane.f32.xlu0 %v241
    %v243 = vpop.xlane.xlu0 %242
    %v244 = vmul.f32 %v240, %v231
    %v245 = vmul.f32 %v243, %v231
    %v246 = vadd.f32 %v244, 1e-05
    %v247 = vadd.f32 %v245, 1e-05
    %v248 = vrsqrt.pop %v246
    %v249 = vrsqrt.pop %v247
    %v250 = vmul.f32 %v234, %v248
    %v251 = vmul.f32 %v235, %v249
    %v252 = vld [vmem:[%s4 + $0x1] sm:$0x1]
    %v253 = vlaneseq
    %v254 = vshrl.u32 %v253, 7
    %v255 = vsub.s32 0, %v254
    %v256 = vrot.slane %v252, %v255
    %v257 = vmul.f32 %v250, %v256
    %v258 = vmul.f32 %v251, %v256
    %v259 = vld [vmem:[%s4 + $0x2] sm:$0x1]
    %v260 = vlaneseq
    %v261 = vshrl.u32 %v260, 7
    %v262 = vsub.s32 0, %v261
    %v263 = vrot.slane %v259, %v262
    %v264 = vadd.f32 %v257, %v263
    %v265 = vadd.f32 %v258, %v263
    %266 = vst.msk [vmem:[#allocation2] sm:$0xff] %vm224, %v264
    %267 = vst.msk [vmem:[#allocation2 + $0x8] sm:$0xff] %vm224, %v265
    // Predicated region
    $region22: #{tpu_custom_call.1} parent=1 // pred_check
      _
    $region23: #{tpu_custom_call.1} parent=1 // pred_check_branch
      %269 = sbr.rel (0) target = $region25
    $region24: #{tpu_custom_call.1} parent=1 // pred_region
      %s271 = ssub.s32 256, 256
      %272 = vsyncadd [#allocation3], %s271
      %s273 = sshll.u32 [#allocation2], 4
      %s274 = int_to_ptr.vmem [resolvable:$true] %s273
      %279 = dma.vmem_to_hbm [thread:$0]  %s274, 256, %s5, [#allocation3], 128, 128, 8
    $region25: #{tpu_custom_call.1} parent=1 // pred_fallthru
      _
    // Predicated region
    $region26: #{tpu_custom_call.1} parent=1 // pred_check
      _
    $region27: #{tpu_custom_call.1} parent=1 // pred_check_branch
      %281 = sbr.rel (0) target = $region29
    $region28: #{tpu_custom_call.1} parent=1 // pred_region
      %282 = dma.done [#allocation3], 256
    $region29: #{tpu_custom_call.1} parent=1 // pred_fallthru
      _
    %283 = vsyncpa [#allocation3], 1

</llo_original>
